<compile_context>
chip_gen: v7x
topology: tpu7x:2x2x1
jax: 0.10.0
libtpu: 0.0.40
codegen_flags: <defaults>
</compile_context>

<pallas_src>
import math

import jax
import jax.numpy as jnp
from jax.experimental import pallas as pl
from jax.experimental.pallas import tpu as pltpu


def build_pe_table(d_model: int, max_seq_length: int = 512,
                   dtype=jnp.float32) -> jnp.ndarray:
    """Sinusoidal table, shape (1, max_seq_length, d_model), built ONCE in the
    activation dtype so the forward path never has to re-cast it."""
    position = jnp.arange(max_seq_length, dtype=jnp.float32)[:, None]          # (L, 1)
    div_term = jnp.exp(
        jnp.arange(0, d_model, 2, dtype=jnp.float32) * (-math.log(10000.0) / d_model)
    )                                                                            # (ceil(D/2),)
    angles = position * div_term                                                 # (L, ceil(D/2))
    pe = jnp.zeros((max_seq_length, d_model), dtype=jnp.float32)
    pe = pe.at[:, 0::2].set(jnp.sin(angles))
    pe = pe.at[:, 1::2].set(jnp.cos(angles[:, : d_model // 2]))                  # odd-D safe
    return pe[None, :, :].astype(dtype)                                          # (1, L, D)


def _pe_add_kernel(x_ref, pe_ref, o_ref):
    # x_ref: (tb, tile) [or (tb, rows, D)] activation block;
    # pe_ref: (1, tile) [or (1, rows, D)] broadcast over the batch sublanes.
    o_ref[...] = (x_ref[...] + pe_ref[...]).astype(o_ref.dtype)


def _round_up(n: int, m: int) -> int:
    return ((n + m - 1) // m) * m


def _round_down(n: int, m: int) -> int:
    return (n // m) * m


_TARGET_X_BYTES = 6 * 1024 * 1024      # per-step x block target (feedback: 4-8 MiB)
_WS_CAP_BYTES = 28 * 1024 * 1024       # double-buffered working-set ceiling (fits all gens)
_VMEM_SLACK_BYTES = 4 * 1024 * 1024
_VMEM_LIMIT_FLOOR = 16 * 1024 * 1024


def positional_encoding_forward(x: jnp.ndarray, pe: jnp.ndarray, *,
                                donate_x: bool = False) -> jnp.ndarray:
    """x: (B, S, D); pe: (1, max_seq, D).  Returns x + pe[:, :S]."""
    B, S, D = x.shape
    max_seq = pe.shape[1]
    assert pe.shape[0] == 1 and pe.shape[-1] == D, "pe / x d_model mismatch"
    assert S <= max_seq, "sequence length exceeds pe table max_seq_length"

    dtype = x.dtype
    itemsize = jnp.dtype(dtype).itemsize
    if pe.dtype != dtype:
        # Fallback only; build the table in the activation dtype (see
        # build_pe_table(dtype=...)) so this per-call cast never fires.
        pe = pe.astype(dtype)

    # Native sublane packing for this dtype (rows per 32-bit-tall vreg tile).
    sublane = 8 * max(1, 4 // itemsize)              # f32:8  bf16:16  int8/fp8:32
    tb = B if B <= sublane else sublane
    pad_tb = _round_up(tb, sublane)                  # VMEM-padded batch rows

    aliases = {0: 0} if donate_x else {}
    n_b = pl.cdiv(B, tb)

    # ---------------- primary path: lane-dense flattening of (S, D) ----------
    granule = 128 // math.gcd(D, 128)                # rows so rows*D % 128 == 0

    # Padded bytes per lane of block, double-buffered (x + out + pe blocks).
    per_lane_ws = 2 * itemsize * (2 * pad_tb + sublane)
    lanes_target = _TARGET_X_BYTES // max(pad_tb * itemsize, 1)
    lanes_cap = _WS_CAP_BYTES // per_lane_ws
    rows = max(granule, _round_down(min(lanes_target, lanes_cap) // D, granule))
    rows = min(rows, _round_up(S, granule))
    tile = rows * D                                  # multiple of 128 by construction
    ws = per_lane_ws * tile                          # actual double-buffered working set

    if ws <= _WS_CAP_BYTES:
        n_s = pl.cdiv(S * D, tile)
        x2 = x.reshape(B, S * D)                     # free row-major reshape
        pe2 = pe.reshape(1, max_seq * D)             # free row-major reshape (no slice copy)
        vmem_limit = max(_VMEM_LIMIT_FLOOR, ws + _VMEM_SLACK_BYTES)

        out2 = pl.pallas_call(
            _pe_add_kernel,
            out_shape=jax.ShapeDtypeStruct((B, S * D), dtype),
            grid_spec=pltpu.PrefetchScalarGridSpec(
                num_scalar_prefetch=0,
                grid=(n_s, n_b),                     # seq tile outer, batch block inner
                in_specs=[
                    pl.BlockSpec((tb, tile), lambda s, b: (b, s)),   # x tile
                    pl.BlockSpec((1, tile), lambda s, b: (0, s)),    # pe: constant over b
                ],
                out_specs=pl.BlockSpec((tb, tile), lambda s, b: (b, s)),
            ),
            compiler_params=pltpu.CompilerParams(
                dimension_semantics=("parallel", "parallel"),
                vmem_limit_bytes=vmem_limit,
            ),
            input_output_aliases=aliases,
        )(x2, pe2)
        return out2.reshape(B, S, D)

    # -------- fallback: very large, 128-unfriendly D -> tile (B, S, D) rows --
    # Last dim is full-D (legal: equals the array extent) and already
    # lane-dense for such large D.
    padded_d = _round_up(D, 128)
    per_row_ws = 2 * itemsize * (2 * pad_tb + sublane) * padded_d
    rows_cap = max(1, _WS_CAP_BYTES // per_row_ws)
    rows = min(S, max(sublane, _round_down(rows_cap, sublane)))
    ws = per_row_ws * rows
    vmem_limit = max(_VMEM_LIMIT_FLOOR, ws + _VMEM_SLACK_BYTES)
    n_s = pl.cdiv(S, rows)
    # TODO(synk): add a D-axis tiling path for the extreme case where even a
    # single (tb, sublane, D) slab exceeds physical VMEM.

    out = pl.pallas_call(
        _pe_add_kernel,
        out_shape=jax.ShapeDtypeStruct((B, S, D), dtype),
        grid_spec=pltpu.PrefetchScalarGridSpec(
            num_scalar_prefetch=0,
            grid=(n_s, n_b),
            in_specs=[
                pl.BlockSpec((tb, rows, D), lambda s, b: (b, s, 0)),
                pl.BlockSpec((1, rows, D), lambda s, b: (0, s, 0)),
            ],
            out_specs=pl.BlockSpec((tb, rows, D), lambda s, b: (b, s, 0)),
        ),
        compiler_params=pltpu.CompilerParams(
            dimension_semantics=("parallel", "parallel"),
            vmem_limit_bytes=vmem_limit,
        ),
        input_output_aliases=aliases,
    )(x, pe)
    return out


if __name__ == "__main__":
    B, S, D = 2, 8, 32
    MAX_SEQ = 512

    key = jax.random.PRNGKey(0)
    x = jax.random.normal(key, (B, S, D), dtype=jnp.float32)

    pe = build_pe_table(D, MAX_SEQ, dtype=x.dtype)   # built once in activation dtype

    out = jax.block_until_ready(positional_encoding_forward(x, pe))

    # Reference check against plain-JAX semantics of the PyTorch forward.
    ref = x + pe[:, :S, :]
    assert out.shape == (B, S, D)
    assert jnp.allclose(out, ref, atol=1e-6), "mismatch vs reference"

    print("KERNEL_OK")
</pallas_src>

<mosaic_0001>
module attributes {stable_mosaic.version = 11 : i64} {
  func.func @_pe_add_kernel(%arg0: i32, %arg1: i32, %arg2: memref<2x256xf32, #tpu.memory_space<vmem>>, %arg3: memref<1x256xf32, #tpu.memory_space<vmem>>, %arg4: memref<2x256xf32, #tpu.memory_space<vmem>>) attributes {dimension_semantics = [#tpu.dimension_semantics<parallel>, #tpu.dimension_semantics<parallel>], iteration_bounds = array<i64: 1, 1>, scalar_prefetch = 0 : i64, scratch_operands = 0 : i64, tpu.core_type = #tpu.core_type<tc>, window_params = [{transform_indices = @transform_0, window_bounds = array<i64: 2, 256>}, {transform_indices = @transform_1, window_bounds = array<i64: 1, 256>}, {transform_indices = @transform_2, window_bounds = array<i64: 2, 256>}]} {
    %c0 = arith.constant 0 : index
    %c0_0 = arith.constant 0 : index
    %0 = vector.load %arg2[%c0, %c0_0] : memref<2x256xf32, #tpu.memory_space<vmem>>, vector<2x256xf32>
    %c0_1 = arith.constant 0 : index
    %c0_2 = arith.constant 0 : index
    %1 = vector.load %arg3[%c0_1, %c0_2] : memref<1x256xf32, #tpu.memory_space<vmem>>, vector<1x256xf32>
    %2 = vector.broadcast %1 : vector<1x256xf32> to vector<2x256xf32>
    %3 = arith.addf %0, %2 : vector<2x256xf32>
    %c0_3 = arith.constant 0 : index
    %c0_4 = arith.constant 0 : index
    %4 = vector.load %arg4[%c0_3, %c0_4] : memref<2x256xf32, #tpu.memory_space<vmem>>, vector<2x256xf32>
    tpu.vector_store %arg4[%c0_3, %c0_4], %3 {strides = array<i32>} : memref<2x256xf32, #tpu.memory_space<vmem>>, vector<2x256xf32>,
    return
  }
  func.func @transform_0(%arg0: i32, %arg1: i32) -> (i32, i32) {
    %c0_i32 = arith.constant 0 : i32
    return %arg1, %arg0 : i32, i32
  }
  func.func @transform_1(%arg0: i32, %arg1: i32) -> (i32, i32) {
    %c0_i32 = arith.constant 0 : i32
    %c0_i32_0 = arith.constant 0 : i32
    return %c0_i32, %arg0 : i32, i32
  }
  func.func @transform_2(%arg0: i32, %arg1: i32) -> (i32, i32) {
    %c0_i32 = arith.constant 0 : i32
    return %arg1, %arg0 : i32, i32
  }
}

</mosaic_0001>

<llo_original>
// kernel: tpu_custom_call.1
$region0: #{tpu_custom_call.1}
  #allocation0 [shape = 'u32[]', space=smem, size = 0x4, offset = 0x4, fixed_abs, tag = 'smem constant byte address 0x4 - core index']
  #allocation1 [shape = 'u32[144,128]{1,0:T(1,128)}', space=vmem, size = 0x12000, scoped, tag = 'internal scratch']
  %s0 = inlined_call_operand.hbm [shape: f32[2,256], index: 0, kind: input, shape index: {}]
  %s1 = inlined_call_operand.hbm [shape: f32[1,16384], index: 1, kind: input, shape index: {}]
  %s2 = inlined_call_operand.hbm [shape: f32[2,256], index: 2, kind: output, shape index: {}]
  %s3 = sld [smem:[#allocation0]]
  $region26: #{tpu_custom_call.1} parent=0
    _
  %s5 = ssub.s32 1, %s3
  %s6 = scalar_select 0, %s5, %s3
  $region1: #{tpu_custom_call.1} parent=0
    #allocation2 [shape = 'u8[2048]{0}', space=vmem, size = 0x800, scoped, tag = 'input window, operand 0, single buffered']
    #allocation3 [shape = 's32[1]{0}', space=sflag, size = 0x4, scoped, tag = 'scoped memory for tpu_custom_call.1']
    #allocation4 [shape = 's32[1]{0}', space=sflag, size = 0x4, scoped, tag = 'scoped memory for tpu_custom_call.1']
    #allocation5 [shape = 'u8[1024]{0}', space=vmem, size = 0x400, scoped, tag = 'input window, operand 1, single buffered']
    #allocation6 [shape = 's32[1]{0}', space=sflag, size = 0x4, scoped, tag = 'scoped memory for tpu_custom_call.1']
    #allocation7 [shape = 'u8[2048]{0}', space=vmem, size = 0x800, scoped, tag = 'output window, operand 0, single buffered']
    %7 = vsyncpa [#allocation3], 0
    %8 = vsyncpa [#allocation6], 0
    %9 = vsyncpa [#allocation4], 0
    // Predicated region
    $region2: #{tpu_custom_call.1} parent=1 // pred_check
      _
    $region3: #{tpu_custom_call.1} parent=1 // pred_check_branch
      %11 = sbr.rel (0) target = $region5
    $region4: #{tpu_custom_call.1} parent=1 // pred_region
      %s13 = ssub.s32 64, 64
      %14 = vsyncadd [#allocation3], %s13
      %s16 = sshll.u32 [#allocation2], 4
      %s17 = int_to_ptr.vmem [resolvable:$true] %s16
      %19 = dma.hbm_to_vmem [thread:$0]  %s0, 64, %s17, [#allocation3]
    $region5: #{tpu_custom_call.1} parent=1 // pred_fallthru
      _
    // Predicated region
    $region6: #{tpu_custom_call.1} parent=1 // pred_check
      _
    $region7: #{tpu_custom_call.1} parent=1 // pred_check_branch
      %21 = sbr.rel (0) target = $region9
    $region8: #{tpu_custom_call.1} parent=1 // pred_region
      %s23 = ssub.s32 32, 32
      %24 = vsyncadd [#allocation6], %s23
      %s26 = sshll.u32 [#allocation5], 4
      %s27 = int_to_ptr.vmem [resolvable:$true] %s26
      %29 = dma.hbm_to_vmem [thread:$0]  %s1, 32, %s27, [#allocation6]
    $region9: #{tpu_custom_call.1} parent=1 // pred_fallthru
      _
    // Predicated region
    $region10: #{tpu_custom_call.1} parent=1 // pred_check
      _
    $region11: #{tpu_custom_call.1} parent=1 // pred_check_branch
      %31 = sbr.rel (0) target = $region13
    $region12: #{tpu_custom_call.1} parent=1 // pred_region
      %32 = dma.done [#allocation3], 64
    $region13: #{tpu_custom_call.1} parent=1 // pred_fallthru
      _
    // Predicated region
    $region14: #{tpu_custom_call.1} parent=1 // pred_check
      _
    $region15: #{tpu_custom_call.1} parent=1 // pred_check_branch
      %34 = sbr.rel (0) target = $region17
    $region16: #{tpu_custom_call.1} parent=1 // pred_region
      %35 = dma.done [#allocation6], 32
    $region17: #{tpu_custom_call.1} parent=1 // pred_fallthru
      _
    %v36 = vld [vmem:[#allocation2] sm:$0xf]
    %v37 = vld [vmem:[#allocation5] sm:$0x3]
    %v39 = vlaneseq
    %v40 = vshrl.u32 %v39, 7
    %v41 = vsub.s32 0, %v40
    %v42 = vrot.slane %v37, %v41
    %v43 = vlaneseq
    %v44 = vshrl.u32 %v43, 7
    %v45 = vsub.s32 1, %v44
    %v46 = vrot.slane %v37, %v45
    %v47 = vcombine.low %v42, %v46
    %v49 = vunpack.c.l.s4 1983009808
    %v50 = vunpack.c.0.s8 %v49
    %v51 = vlaneseq
    %v52 = vshrl.u32 %v51, 7
    %v53 = vsub.s32 %v50, %v52
    %v54 = vrot.slane %v47, %v53
    %v56 = vadd.f32 %v36, %v54
    %57 = vst [vmem:[#allocation7] sm:$0xf] %v56
    // Predicated region
    $region18: #{tpu_custom_call.1} parent=1 // pred_check
      _
    $region19: #{tpu_custom_call.1} parent=1 // pred_check_branch
      %59 = sbr.rel (0) target = $region21
    $region20: #{tpu_custom_call.1} parent=1 // pred_region
      %s61 = ssub.s32 64, 64
      %62 = vsyncadd [#allocation4], %s61
      %s64 = sshll.u32 [#allocation7], 4
      %s65 = int_to_ptr.vmem [resolvable:$true] %s64
      %67 = dma.vmem_to_hbm [thread:$0]  %s65, 64, %s2, [#allocation4]
    $region21: #{tpu_custom_call.1} parent=1 // pred_fallthru
      _
    // Predicated region
    $region22: #{tpu_custom_call.1} parent=1 // pred_check
      _
    $region23: #{tpu_custom_call.1} parent=1 // pred_check_branch
      %69 = sbr.rel (0) target = $region25
    $region24: #{tpu_custom_call.1} parent=1 // pred_region
      %70 = dma.done [#allocation4], 64
    $region25: #{tpu_custom_call.1} parent=1 // pred_fallthru
      _
    %71 = vsyncpa [#allocation3], 1
    %72 = vsyncpa [#allocation6], 1
    %73 = vsyncpa [#allocation4], 1

</llo_original>
